<compile_context>
chip_gen: v7x
topology: tpu7x:2x2x1
jax: 0.10.0
libtpu: 0.0.40
codegen_flags: <defaults>
</compile_context>

<pallas_src>
import functools
import math

import jax
import jax.numpy as jnp
from jax.experimental import pallas as pl
from jax.experimental.pallas import tpu as pltpu

_CHUNK_BYTES = 4 << 20  # split copies larger than ~4 MiB into multiple DMAs
_MAX_CHUNKS = 8


def _slice_copy_kernel(start_ref, x_ref, o_ref, sems, *, chunk_offsets, chunk_lens):
    """HBM->HBM copy of rows [start, start+length) split into static chunks.

    start_ref : SMEM (1,) int32 — runtime start row (scalar prefetch).
    x_ref     : full input in HBM (memory_space=pl.ANY).
    o_ref     : full output in HBM (memory_space=pl.ANY).
    sems      : DMA semaphore array, one per chunk.
    """
    start = start_ref[0]
    copies = []
    # Issue every chunk's DMA before waiting on any of them so multiple
    # transfers are in flight (matters for multi-MiB slices; for tiny inputs
    # there is a single chunk and this degenerates to start(); wait()).
    for i, (off, ln) in enumerate(zip(chunk_offsets, chunk_lens)):
        cp = pltpu.make_async_copy(
            x_ref.at[pl.ds(start + off, ln)],
            o_ref.at[pl.ds(off, ln)],
            sems.at[i],
        )
        cp.start()
        copies.append(cp)
    for cp in copies:
        cp.wait()


def slice_rows_xla(x: jax.Array, start, stop) -> jax.Array:
    """Fast path: native XLA slice (fusion candidate, no HBM round trip).

    Prefer this whenever the result feeds ordinary XLA code; keep the Pallas
    kernel below only as a manual-DMA building block.
    """
    start_c, stop_c, _ = slice(start, stop).indices(x.shape[0])
    return jax.lax.slice_in_dim(x, start_c, max(start_c, stop_c), axis=0)


def slice_rows(x: jax.Array, start, stop) -> jax.Array:
    """Pallas equivalent of PyTorch `x[start:stop, :]` (step == 1, leading dim)."""
    rows = x.shape[0]
    # Python / PyTorch slice semantics: negatives, None, clamping.
    start_c, stop_c, _ = slice(start, stop).indices(rows)
    length = max(0, stop_c - start_c)
    out_shape = (length,) + x.shape[1:]
    dtype = x.dtype

    if length == 0:
        # Zero-sized buffers are rejected by Mosaic; emit the empty result directly.
        return jnp.zeros(out_shape, dtype=dtype)

    nbytes = math.prod(out_shape) * jnp.dtype(dtype).itemsize

    # Static chunking of the row window (lengths/offsets are compile-time;
    # only the start row is a runtime scalar).
    num_chunks = 1
    if nbytes >= _CHUNK_BYTES:
        num_chunks = max(1, min(_MAX_CHUNKS, length, pl.cdiv(nbytes, _CHUNK_BYTES)))
    base, rem = divmod(length, num_chunks)
    chunk_offsets, chunk_lens, off = [], [], 0
    for i in range(num_chunks):
        ln = base + (1 if i < rem else 0)
        chunk_offsets.append(off)
        chunk_lens.append(ln)
        off += ln

    kernel = functools.partial(
        _slice_copy_kernel,
        chunk_offsets=tuple(chunk_offsets),
        chunk_lens=tuple(chunk_lens),
    )

    # Runtime start via scalar prefetch -> same compiled kernel for every
    # window of the same length.
    start_arr = jnp.asarray([start_c], dtype=jnp.int32)

    return pl.pallas_call(
        kernel,
        out_shape=jax.ShapeDtypeStruct(out_shape, dtype),
        grid_spec=pltpu.PrefetchScalarGridSpec(
            num_scalar_prefetch=1,
            grid=(1,),
            in_specs=[pl.BlockSpec(memory_space=pl.ANY)],
            out_specs=pl.BlockSpec(memory_space=pl.ANY),
            scratch_shapes=[pltpu.SemaphoreType.DMA((num_chunks,))],
        ),
        compiler_params=pltpu.CompilerParams(dimension_semantics=("arbitrary",)),
        cost_estimate=pl.CostEstimate(
            flops=0, transcendentals=0, bytes_accessed=2 * nbytes
        ),
    )(start_arr, x)


if __name__ == "__main__":
    key = jax.random.PRNGKey(0)
    # Small 2D input consistent with the module's forward: slice along dim 0.
    x = jax.random.normal(key, (16, 32), dtype=jnp.float32)
    start, stop = 2, 10

    out = jax.block_until_ready(slice_rows(x, start, stop))
    ref = x[start:stop, :]
    assert out.shape == ref.shape, (out.shape, ref.shape)
    assert jnp.allclose(out, ref), "mismatch vs reference slice"

    # Negative-index slice (PyTorch semantics). Same length as above ->
    # reuses the already-compiled kernel (start is a runtime scalar).
    out2 = jax.block_until_ready(slice_rows(x, -8, 16))
    ref2 = x[-8:16, :]
    assert out2.shape == ref2.shape, (out2.shape, ref2.shape)
    assert jnp.allclose(out2, ref2), "mismatch vs reference negative slice"

    # Another same-length window (exercises runtime-start reuse).
    out3 = jax.block_until_ready(slice_rows(x, 4, 12))
    assert jnp.allclose(out3, x[4:12, :]), "mismatch vs reference shifted slice"

    # Empty slice is handled without launching a kernel.
    out4 = slice_rows(x, 10, 4)
    assert out4.shape == (0, 32)

    # XLA fast path agrees with the kernel.
    assert jnp.allclose(slice_rows_xla(x, start, stop), ref)

    print("KERNEL_OK")
</pallas_src>

<mosaic_0001>
module attributes {stable_mosaic.version = 11 : i64} {
  func.func @_slice_copy_kernel(%arg0: i32, %arg1: memref<1xi32, #tpu.memory_space<smem>>, %arg2: memref<16x32xf32, #tpu.memory_space<any>>, %arg3: memref<8x32xf32, #tpu.memory_space<any>>, %arg4: memref<1x!tpu.dma_semaphore, #tpu.memory_space<semaphore_mem>>) attributes {dimension_semantics = [#tpu.dimension_semantics<arbitrary>], iteration_bounds = array<i64: 1>, scalar_prefetch = 1 : i64, scratch_operands = 1 : i64, tpu.core_type = #tpu.core_type<tc>, window_params = [{}, {}]} {
    %c0 = arith.constant 0 : index
    %0 = memref.load %arg1[%c0] : memref<1xi32, #tpu.memory_space<smem>>
    %c0_i32 = arith.constant 0 : i32
    %1 = arith.addi %0, %c0_i32 : i32
    %c0_i32_0 = arith.constant 0 : i32
    %c0_i32_1 = arith.constant 0 : i32
    %2 = tpu.memref_slice %arg2[%1, %c0_i32_1] : memref<16x32xf32, #tpu.memory_space<any>> -> memref<8x32xf32, #tpu.memory_space<any>>
    %c0_i32_2 = arith.constant 0 : i32
    %c0_i32_3 = arith.constant 0 : i32
    %3 = tpu.memref_slice %arg3[%c0_i32_2, %c0_i32_3] : memref<8x32xf32, #tpu.memory_space<any>> -> memref<8x32xf32, #tpu.memory_space<any>>
    %4 = tpu.memref_slice %arg4[%c0_i32_0] : memref<1x!tpu.dma_semaphore, #tpu.memory_space<semaphore_mem>> -> memref<1x!tpu.dma_semaphore, #tpu.memory_space<semaphore_mem>>
    %5 = tpu.memref_squeeze %4 : memref<1x!tpu.dma_semaphore, #tpu.memory_space<semaphore_mem>> -> memref<!tpu.dma_semaphore, #tpu.memory_space<semaphore_mem>>
    tpu.enqueue_dma source(%2 : memref<8x32xf32, #tpu.memory_space<any>>) target(%3 : memref<8x32xf32, #tpu.memory_space<any>>) target_semaphore(%5 : memref<!tpu.dma_semaphore, #tpu.memory_space<semaphore_mem>>)
    %c0_i32_4 = arith.constant 0 : i32
    %c0_i32_5 = arith.constant 0 : i32
    %6 = tpu.memref_slice %arg2[%1, %c0_i32_5] : memref<16x32xf32, #tpu.memory_space<any>> -> memref<8x32xf32, #tpu.memory_space<any>>
    %c0_i32_6 = arith.constant 0 : i32
    %c0_i32_7 = arith.constant 0 : i32
    %7 = tpu.memref_slice %arg3[%c0_i32_6, %c0_i32_7] : memref<8x32xf32, #tpu.memory_space<any>> -> memref<8x32xf32, #tpu.memory_space<any>>
    %8 = tpu.memref_slice %arg4[%c0_i32_4] : memref<1x!tpu.dma_semaphore, #tpu.memory_space<semaphore_mem>> -> memref<1x!tpu.dma_semaphore, #tpu.memory_space<semaphore_mem>>
    %9 = tpu.memref_squeeze %8 : memref<1x!tpu.dma_semaphore, #tpu.memory_space<semaphore_mem>> -> memref<!tpu.dma_semaphore, #tpu.memory_space<semaphore_mem>>
    tpu.wait_dma2 semaphore(%9 : memref<!tpu.dma_semaphore, #tpu.memory_space<semaphore_mem>>) src(%6 : memref<8x32xf32, #tpu.memory_space<any>>) dst(%7 : memref<8x32xf32, #tpu.memory_space<any>>)
    return
  }
}

</mosaic_0001>

<llo_original>
// kernel: tpu_custom_call.1
$region0: #{tpu_custom_call.1}
  #allocation0 [shape = 'u32[]', space=smem, size = 0x4, offset = 0x4, fixed_abs, tag = 'smem constant byte address 0x4 - core index']
  #allocation1 [shape = 'u32[144,128]{1,0:T(1,128)}', space=vmem, size = 0x12000, scoped, tag = 'internal scratch']
  #allocation2 [shape = 's32[1]{0}', space=sflag, size = 0x4, scoped, tag = 'scratch operand']
  #allocation3 [shape = 's32[1]{0}', space=sflag, size = 0x4, scoped, tag = 'scoped memory for tpu_custom_call.1']
  #allocation4 [shape = 's32[1]{0:T(128)S(6)}', space=smem, size = 0x200, scoped, tag = 'prefetched SMEM operand 0']
  #allocation5 [shape = 's32[]', space=sflag, size = 0x4, offset = 0, fixed_abs, tag = 'sflag constant byte address 0x0 - dummy sync flag']
  #allocation6 [shape = 'u32[0]{0}', space=smem, size = 0, offset = 0, fixed_abs, tag = 'smem constant byte address 0x0 - null']
  %s0 = inlined_call_operand.<no memory space> [shape: s32[1], index: 0, kind: input, shape index: {}]
  %s1 = inlined_call_operand.hbm [shape: f32[16,32], index: 1, kind: input, shape index: {}]
  %s2 = inlined_call_operand.hbm [shape: f32[8,32], index: 2, kind: output, shape index: {}]
  %s3 = sld [smem:[#allocation0]]
  $region2: #{tpu_custom_call.1} parent=0
    _
  %s5 = ssub.s32 1, %s3
  %s6 = scalar_select 0, %s5, %s3
  %7 = sst [smem:[#allocation4]] %s0
  %s8 = sld [smem:[#allocation4]]
  %s9 = smul.addr %s8, 16
  %s10 = scalar_lea.hbm %s1, %s9
  %s12 = sshll.u32 1, 14
  %s13 = sxor.u32 4294967295, %s12
  %s16 = sshll.u32 3, 24
  %s17 = sxor.u32 4294967295, %s16
  %s18 = sand.u32 0, %s17
  %s20 = sor.u32 %s18, 0
  %23 = dma.general %s10, 128, %s2, [#allocation2], [#allocation5], [#allocation6], %s20, 0
  %s24 = smul.u32 8, 1
  %s25 = sshll.u32 %s24, 4
  %26 = dma.done [#allocation2], %s25
  %27 = vsyncmov [#allocation2]
  %s28 = vpop.sfrf %27
  %p29 = scmp.eq.s32.totalorder %s28, 0
  %p30 = pneg %p29
  %32 = shalt.err (%p30)

</llo_original>
